<compile_context>
chip_gen: v6e
topology: v6e:2x2x1
jax: 0.10.0
libtpu: 0.0.40
codegen_flags: <defaults>
</compile_context>

<pallas_src>
import jax
import jax.numpy as jnp
from jax import lax
from jax.experimental import pallas as pl
from jax.experimental.pallas import tpu as pltpu


def _round_up(x, m):
    return (x + m - 1) // m * m


def _dan_kernel(ids_ref, emb_ref, w1_ref, b1_ref, wo_ref, bo_ref, out_ref):
    Bb, T = ids_ref.shape
    V = emb_ref.shape[0]

    ids = ids_ref[...]                                           # (Bb, T) int32
    v_iota = lax.broadcasted_iota(jnp.int32, (Bb, V), 1)         # (Bb, V)
    t_iota = lax.broadcasted_iota(jnp.int32, (Bb, T), 1)         # (Bb, T)

    # counts[b, v] = #occurrences of token v in ids[b, :].
    # fori_loop (not a fully-unrolled Python loop) keeps the instruction stream
    # and vreg pressure bounded for realistic T; each step is a lane-dense
    # compare + add over the (Bb, V) slab.  The column-t token is extracted
    # with a masked lane-reduce to avoid dynamic lane-dim slicing.
    def body(t, counts):
        tok = jnp.sum(jnp.where(t_iota == t, ids, 0), axis=1, keepdims=True)  # (Bb, 1)
        return counts + (tok == v_iota).astype(jnp.int32)

    counts = lax.fori_loop(0, T, body, jnp.zeros((Bb, V), jnp.int32),
                           unroll=min(8, T))

    # Embedding gather + mean(dim=1) fused into one bf16 MXU matmul (f32 acc).
    inv_t = jnp.float32(1.0 / T)
    avg = jnp.dot(counts.astype(jnp.bfloat16), emb_ref[...],
                  preferred_element_type=jnp.float32) * inv_t    # (Bb, E) f32

    # fc layer + ReLU (dropout == identity in eval mode).
    h = jnp.dot(avg.astype(jnp.bfloat16), w1_ref[...],
                preferred_element_type=jnp.float32) + b1_ref[...]
    h = jnp.maximum(h, 0.0)                                      # (Bb, H) f32

    # Output layer.
    logits = jnp.dot(h.astype(jnp.bfloat16), wo_ref[...],
                     preferred_element_type=jnp.float32) + bo_ref[...]

    # log_softmax along dim=1 (n_classes is tiny; masked store cost is noise).
    m = jnp.max(logits, axis=1, keepdims=True)
    lse = jnp.log(jnp.sum(jnp.exp(logits - m), axis=1, keepdims=True)) + m
    out_ref[...] = (logits - lse).astype(out_ref.dtype)


def dan_forward(ids, emb, w1, b1, wo, bo, *, block_b=256):
    """DAN forward.  ids: (B, T) int token ids -> (B, n_classes) f32 log-probs.

    Weights are (in_features, out_features).  MXU compute runs with bf16
    operands and f32 accumulation.  block_b: batch rows per grid step.
    """
    ids = ids.astype(jnp.int32)
    B, T = ids.shape
    V, E = emb.shape
    H = w1.shape[1]
    n_classes = wo.shape[1]

    # ---- Pad V/E/H to lane/sublane-friendly multiples of 128.  Zero padding
    # is inert: padded vocab rows are never counted, padded E/H rows/cols carry
    # zero weights and biases. ----
    Vp = _round_up(V, 128)
    Ep = _round_up(E, 128)
    Hp = _round_up(H, 128)
    emb_p = jnp.zeros((Vp, Ep), jnp.bfloat16).at[:V, :E].set(emb.astype(jnp.bfloat16))
    w1_p = jnp.zeros((Ep, Hp), jnp.bfloat16).at[:E, :H].set(w1.astype(jnp.bfloat16))
    b1_p = jnp.zeros((1, Hp), jnp.float32).at[:, :H].set(
        b1.reshape(1, H).astype(jnp.float32))
    wo_p = jnp.zeros((Hp, n_classes), jnp.bfloat16).at[:H, :].set(
        wo.astype(jnp.bfloat16))
    bo_p = bo.reshape(1, n_classes).astype(jnp.float32)

    # ---- Batch blocking: big blocks feed the MXU M dimension; for large
    # batches keep >= 2 grid steps so the "parallel" axis can shard across
    # TensorCores on megacore parts (v7x). ----
    bb = min(block_b, _round_up(B, 8))
    if B > 128 and B <= bb:
        bb = pl.cdiv(B, 2)
    bb = max(8, _round_up(bb, 8))
    n_blocks = pl.cdiv(B, bb)
    Bp = n_blocks * bb
    if Bp != B:
        ids = jnp.pad(ids, ((0, Bp - B), (0, 0)))

    # ---- VMEM budget: weights single-buffered, ids/out double-buffered,
    # plus headroom for the (bb, Vp/Ep/Hp) intermediates.  Cap at 64 MiB so the
    # request is also valid on v7x. ----
    weight_bytes = (emb_p.size + w1_p.size + wo_p.size) * 2 \
        + (b1_p.size + bo_p.size) * 4
    block_bytes = 2 * (bb * T * 4 + bb * n_classes * 4)
    interm_bytes = bb * (Vp + Ep + Hp) * 8
    vmem_limit = int(min(weight_bytes + block_bytes + interm_bytes + (8 << 20),
                         64 << 20))

    resident = dict(pipeline_mode=pl.Buffered(1))   # constant index_map -> 1 buffer
    out = pl.pallas_call(
        _dan_kernel,
        out_shape=jax.ShapeDtypeStruct((Bp, n_classes), jnp.float32),
        grid=(n_blocks,),
        in_specs=[
            pl.BlockSpec((bb, T), lambda i: (i, 0)),                      # token ids
            pl.BlockSpec((Vp, Ep), lambda i: (0, 0), **resident),         # Emb (bf16)
            pl.BlockSpec((Ep, Hp), lambda i: (0, 0), **resident),         # W1  (bf16)
            pl.BlockSpec((1, Hp), lambda i: (0, 0), **resident),          # b1  (f32)
            pl.BlockSpec((Hp, n_classes), lambda i: (0, 0), **resident),  # Wo  (bf16)
            pl.BlockSpec((1, n_classes), lambda i: (0, 0), **resident),   # bo  (f32)
        ],
        out_specs=pl.BlockSpec((bb, n_classes), lambda i: (i, 0)),
        compiler_params=pltpu.CompilerParams(
            dimension_semantics=("parallel",),
            vmem_limit_bytes=vmem_limit,
        ),
    )(ids, emb_p, w1_p, b1_p, wo_p, bo_p)
    return out[:B]


def init_params(key, vocab_size, embed_dim, hidden_size, n_classes=2):
    k_emb, k_w1, k_b1, k_wo, k_bo = jax.random.split(key, 5)
    # nn.Embedding: N(0, 1); nn.Linear: U(-1/sqrt(fan_in), 1/sqrt(fan_in))
    emb = jax.random.normal(k_emb, (vocab_size, embed_dim), dtype=jnp.float32)
    lim1 = 1.0 / (embed_dim ** 0.5)
    w1 = jax.random.uniform(k_w1, (embed_dim, hidden_size), jnp.float32, -lim1, lim1)
    b1 = jax.random.uniform(k_b1, (1, hidden_size), jnp.float32, -lim1, lim1)
    limo = 1.0 / (hidden_size ** 0.5)
    wo = jax.random.uniform(k_wo, (hidden_size, n_classes), jnp.float32, -limo, limo)
    bo = jax.random.uniform(k_bo, (1, n_classes), jnp.float32, -limo, limo)
    return emb, w1, b1, wo, bo


if __name__ == "__main__":
    B, T = 2, 8
    vocab_size, embed_dim, hidden_size = 64, 32, 32

    key = jax.random.PRNGKey(0)
    k_ids, k_params = jax.random.split(key)
    ids = jax.random.randint(k_ids, (B, T), 0, vocab_size, dtype=jnp.int32)
    emb, w1, b1, wo, bo = init_params(k_params, vocab_size, embed_dim, hidden_size)

    out = dan_forward(ids, emb, w1, b1, wo, bo)
    jax.block_until_ready(out)

    # Sanity check vs. plain-JAX f32 reference (tolerance relaxed for bf16
    # MXU operands; accumulation stays f32).
    avg = jnp.take(emb, ids, axis=0).mean(axis=1)
    h = jnp.maximum(avg @ w1 + b1, 0.0)
    logits = h @ wo + bo
    ref = logits - jax.scipy.special.logsumexp(logits, axis=1, keepdims=True)
    assert jnp.allclose(out, ref, atol=3e-2, rtol=3e-2), (out, ref)

    print("KERNEL_OK")
</pallas_src>

<mosaic_0001>
module attributes {stable_mosaic.version = 11 : i64} {
  func.func @_dan_kernel(%arg0: i32, %arg1: memref<8x8xi32, #tpu.memory_space<vmem>>, %arg2: memref<128x128xbf16, #tpu.memory_space<vmem>>, %arg3: memref<128x128xbf16, #tpu.memory_space<vmem>>, %arg4: memref<1x128xf32, #tpu.memory_space<vmem>>, %arg5: memref<128x2xbf16, #tpu.memory_space<vmem>>, %arg6: memref<1x2xf32, #tpu.memory_space<vmem>>, %arg7: memref<8x2xf32, #tpu.memory_space<vmem>>) attributes {dimension_semantics = [#tpu.dimension_semantics<parallel>], iteration_bounds = array<i64: 1>, scalar_prefetch = 0 : i64, scratch_operands = 0 : i64, tpu.core_type = #tpu.core_type<tc>, window_params = [{transform_indices = @transform_0, window_bounds = array<i64: 8, 8>}, {pipeline_mode = #tpu.pipeline_mode<synchronous>, transform_indices = @transform_1, window_bounds = array<i64: 128, 128>}, {pipeline_mode = #tpu.pipeline_mode<synchronous>, transform_indices = @transform_2, window_bounds = array<i64: 128, 128>}, {pipeline_mode = #tpu.pipeline_mode<synchronous>, transform_indices = @transform_3, window_bounds = array<i64: 1, 128>}, {pipeline_mode = #tpu.pipeline_mode<synchronous>, transform_indices = @transform_4, window_bounds = array<i64: 128, 2>}, {pipeline_mode = #tpu.pipeline_mode<synchronous>, transform_indices = @transform_5, window_bounds = array<i64: 1, 2>}, {transform_indices = @transform_6, window_bounds = array<i64: 8, 2>}]} {
    %c0 = arith.constant 0 : index
    %c0_0 = arith.constant 0 : index
    %0 = vector.load %arg1[%c0, %c0_0] : memref<8x8xi32, #tpu.memory_space<vmem>>, vector<8x8xi32>
    %1 = tpu.iota {dimensions = array<i32: 1>} : vector<8x128xi32>
    %2 = tpu.iota {dimensions = array<i32: 1>} : vector<8x8xi32>
    %c0_i32 = arith.constant 0 : i32
    %3 = vector.broadcast %c0_i32 : i32 to vector<8x128xi32>
    %c0_i32_1 = arith.constant 0 : i32
    %4 = vector.broadcast %c0_i32_1 : i32 to vector<8x8xi32>
    %5 = arith.cmpi eq, %2, %4 : vector<8x8xi32>
    %c0_i32_2 = arith.constant 0 : i32
    %6 = vector.broadcast %c0_i32_2 : i32 to vector<8x8xi32>
    %7 = arith.select %5, %0, %6 : vector<8x8xi1>, vector<8x8xi32>
    %cst = arith.constant dense<0> : vector<8xi32>
    %8 = vector.multi_reduction <add>, %7, %cst [1] : vector<8x8xi32> to vector<8xi32>
    %9 = vector.shape_cast %8 : vector<8xi32> to vector<8x1xi32>
    %10 = vector.broadcast %9 : vector<8x1xi32> to vector<8x128xi32>
    %11 = arith.cmpi eq, %10, %1 : vector<8x128xi32>
    %12 = arith.extui %11 : vector<8x128xi1> to vector<8x128xi32>
    %13 = arith.addi %3, %12 : vector<8x128xi32>
    %c1_i32 = arith.constant 1 : i32
    %14 = vector.broadcast %c1_i32 : i32 to vector<8x8xi32>
    %15 = arith.cmpi eq, %2, %14 : vector<8x8xi32>
    %c0_i32_3 = arith.constant 0 : i32
    %16 = vector.broadcast %c0_i32_3 : i32 to vector<8x8xi32>
    %17 = arith.select %15, %0, %16 : vector<8x8xi1>, vector<8x8xi32>
    %cst_4 = arith.constant dense<0> : vector<8xi32>
    %18 = vector.multi_reduction <add>, %17, %cst_4 [1] : vector<8x8xi32> to vector<8xi32>
    %19 = vector.shape_cast %18 : vector<8xi32> to vector<8x1xi32>
    %20 = vector.broadcast %19 : vector<8x1xi32> to vector<8x128xi32>
    %21 = arith.cmpi eq, %20, %1 : vector<8x128xi32>
    %22 = arith.extui %21 : vector<8x128xi1> to vector<8x128xi32>
    %23 = arith.addi %13, %22 : vector<8x128xi32>
    %c2_i32 = arith.constant 2 : i32
    %24 = vector.broadcast %c2_i32 : i32 to vector<8x8xi32>
    %25 = arith.cmpi eq, %2, %24 : vector<8x8xi32>
    %c0_i32_5 = arith.constant 0 : i32
    %26 = vector.broadcast %c0_i32_5 : i32 to vector<8x8xi32>
    %27 = arith.select %25, %0, %26 : vector<8x8xi1>, vector<8x8xi32>
    %cst_6 = arith.constant dense<0> : vector<8xi32>
    %28 = vector.multi_reduction <add>, %27, %cst_6 [1] : vector<8x8xi32> to vector<8xi32>
    %29 = vector.shape_cast %28 : vector<8xi32> to vector<8x1xi32>
    %30 = vector.broadcast %29 : vector<8x1xi32> to vector<8x128xi32>
    %31 = arith.cmpi eq, %30, %1 : vector<8x128xi32>
    %32 = arith.extui %31 : vector<8x128xi1> to vector<8x128xi32>
    %33 = arith.addi %23, %32 : vector<8x128xi32>
    %c3_i32 = arith.constant 3 : i32
    %34 = vector.broadcast %c3_i32 : i32 to vector<8x8xi32>
    %35 = arith.cmpi eq, %2, %34 : vector<8x8xi32>
    %c0_i32_7 = arith.constant 0 : i32
    %36 = vector.broadcast %c0_i32_7 : i32 to vector<8x8xi32>
    %37 = arith.select %35, %0, %36 : vector<8x8xi1>, vector<8x8xi32>
    %cst_8 = arith.constant dense<0> : vector<8xi32>
    %38 = vector.multi_reduction <add>, %37, %cst_8 [1] : vector<8x8xi32> to vector<8xi32>
    %39 = vector.shape_cast %38 : vector<8xi32> to vector<8x1xi32>
    %40 = vector.broadcast %39 : vector<8x1xi32> to vector<8x128xi32>
    %41 = arith.cmpi eq, %40, %1 : vector<8x128xi32>
    %42 = arith.extui %41 : vector<8x128xi1> to vector<8x128xi32>
    %43 = arith.addi %33, %42 : vector<8x128xi32>
    %c4_i32 = arith.constant 4 : i32
    %44 = vector.broadcast %c4_i32 : i32 to vector<8x8xi32>
    %45 = arith.cmpi eq, %2, %44 : vector<8x8xi32>
    %c0_i32_9 = arith.constant 0 : i32
    %46 = vector.broadcast %c0_i32_9 : i32 to vector<8x8xi32>
    %47 = arith.select %45, %0, %46 : vector<8x8xi1>, vector<8x8xi32>
    %cst_10 = arith.constant dense<0> : vector<8xi32>
    %48 = vector.multi_reduction <add>, %47, %cst_10 [1] : vector<8x8xi32> to vector<8xi32>
    %49 = vector.shape_cast %48 : vector<8xi32> to vector<8x1xi32>
    %50 = vector.broadcast %49 : vector<8x1xi32> to vector<8x128xi32>
    %51 = arith.cmpi eq, %50, %1 : vector<8x128xi32>
    %52 = arith.extui %51 : vector<8x128xi1> to vector<8x128xi32>
    %53 = arith.addi %43, %52 : vector<8x128xi32>
    %c5_i32 = arith.constant 5 : i32
    %54 = vector.broadcast %c5_i32 : i32 to vector<8x8xi32>
    %55 = arith.cmpi eq, %2, %54 : vector<8x8xi32>
    %c0_i32_11 = arith.constant 0 : i32
    %56 = vector.broadcast %c0_i32_11 : i32 to vector<8x8xi32>
    %57 = arith.select %55, %0, %56 : vector<8x8xi1>, vector<8x8xi32>
    %cst_12 = arith.constant dense<0> : vector<8xi32>
    %58 = vector.multi_reduction <add>, %57, %cst_12 [1] : vector<8x8xi32> to vector<8xi32>
    %59 = vector.shape_cast %58 : vector<8xi32> to vector<8x1xi32>
    %60 = vector.broadcast %59 : vector<8x1xi32> to vector<8x128xi32>
    %61 = arith.cmpi eq, %60, %1 : vector<8x128xi32>
    %62 = arith.extui %61 : vector<8x128xi1> to vector<8x128xi32>
    %63 = arith.addi %53, %62 : vector<8x128xi32>
    %c6_i32 = arith.constant 6 : i32
    %64 = vector.broadcast %c6_i32 : i32 to vector<8x8xi32>
    %65 = arith.cmpi eq, %2, %64 : vector<8x8xi32>
    %c0_i32_13 = arith.constant 0 : i32
    %66 = vector.broadcast %c0_i32_13 : i32 to vector<8x8xi32>
    %67 = arith.select %65, %0, %66 : vector<8x8xi1>, vector<8x8xi32>
    %cst_14 = arith.constant dense<0> : vector<8xi32>
    %68 = vector.multi_reduction <add>, %67, %cst_14 [1] : vector<8x8xi32> to vector<8xi32>
    %69 = vector.shape_cast %68 : vector<8xi32> to vector<8x1xi32>
    %70 = vector.broadcast %69 : vector<8x1xi32> to vector<8x128xi32>
    %71 = arith.cmpi eq, %70, %1 : vector<8x128xi32>
    %72 = arith.extui %71 : vector<8x128xi1> to vector<8x128xi32>
    %73 = arith.addi %63, %72 : vector<8x128xi32>
    %c7_i32 = arith.constant 7 : i32
    %74 = vector.broadcast %c7_i32 : i32 to vector<8x8xi32>
    %75 = arith.cmpi eq, %2, %74 : vector<8x8xi32>
    %c0_i32_15 = arith.constant 0 : i32
    %76 = vector.broadcast %c0_i32_15 : i32 to vector<8x8xi32>
    %77 = arith.select %75, %0, %76 : vector<8x8xi1>, vector<8x8xi32>
    %cst_16 = arith.constant dense<0> : vector<8xi32>
    %78 = vector.multi_reduction <add>, %77, %cst_16 [1] : vector<8x8xi32> to vector<8xi32>
    %79 = vector.shape_cast %78 : vector<8xi32> to vector<8x1xi32>
    %80 = vector.broadcast %79 : vector<8x1xi32> to vector<8x128xi32>
    %81 = arith.cmpi eq, %80, %1 : vector<8x128xi32>
    %82 = arith.extui %81 : vector<8x128xi1> to vector<8x128xi32>
    %83 = arith.addi %73, %82 : vector<8x128xi32>
    %c8_i32 = arith.constant 8 : i32
    %84 = arith.sitofp %83 : vector<8x128xi32> to vector<8x128xbf16>
    %c0_17 = arith.constant 0 : index
    %c0_18 = arith.constant 0 : index
    %85 = vector.load %arg2[%c0_17, %c0_18] : memref<128x128xbf16, #tpu.memory_space<vmem>>, vector<128x128xbf16>
    %cst_19 = arith.constant dense<0.000000e+00> : vector<8x128xf32>
    %86 = tpu.matmul %84, %85, %cst_19 {dimension_numbers = #tpu.dot_dimension_numbers<[1], [0], [0], [1], [0, 0, 1, 1], [], []>} : vector<8x128xbf16>, vector<128x128xbf16>, vector<8x128xf32> -> vector<8x128xf32>
    %cst_20 = arith.constant 1.250000e-01 : f32
    %87 = vector.broadcast %cst_20 : f32 to vector<8x128xf32>
    %88 = arith.mulf %86, %87 : vector<8x128xf32>
    %89 = arith.truncf %88 : vector<8x128xf32> to vector<8x128xbf16>
    %c0_21 = arith.constant 0 : index
    %c0_22 = arith.constant 0 : index
    %90 = vector.load %arg3[%c0_21, %c0_22] : memref<128x128xbf16, #tpu.memory_space<vmem>>, vector<128x128xbf16>
    %cst_23 = arith.constant dense<0.000000e+00> : vector<8x128xf32>
    %91 = tpu.matmul %89, %90, %cst_23 {dimension_numbers = #tpu.dot_dimension_numbers<[1], [0], [0], [1], [0, 0, 1, 1], [], []>} : vector<8x128xbf16>, vector<128x128xbf16>, vector<8x128xf32> -> vector<8x128xf32>
    %c0_24 = arith.constant 0 : index
    %c0_25 = arith.constant 0 : index
    %92 = vector.load %arg4[%c0_24, %c0_25] : memref<1x128xf32, #tpu.memory_space<vmem>>, vector<1x128xf32>
    %93 = vector.broadcast %92 : vector<1x128xf32> to vector<8x128xf32>
    %94 = arith.addf %91, %93 : vector<8x128xf32>
    %cst_26 = arith.constant 0.000000e+00 : f32
    %95 = vector.broadcast %cst_26 : f32 to vector<8x128xf32>
    %96 = arith.maximumf %94, %95 : vector<8x128xf32>
    %97 = arith.truncf %96 : vector<8x128xf32> to vector<8x128xbf16>
    %c0_27 = arith.constant 0 : index
    %c0_28 = arith.constant 0 : index
    %98 = vector.load %arg5[%c0_27, %c0_28] : memref<128x2xbf16, #tpu.memory_space<vmem>>, vector<128x2xbf16>
    %cst_29 = arith.constant dense<0.000000e+00> : vector<8x2xf32>
    %99 = tpu.matmul %97, %98, %cst_29 {dimension_numbers = #tpu.dot_dimension_numbers<[1], [0], [0], [1], [0, 0, 1, 1], [], []>} : vector<8x128xbf16>, vector<128x2xbf16>, vector<8x2xf32> -> vector<8x2xf32>
    %c0_30 = arith.constant 0 : index
    %c0_31 = arith.constant 0 : index
    %100 = vector.load %arg6[%c0_30, %c0_31] : memref<1x2xf32, #tpu.memory_space<vmem>>, vector<1x2xf32>
    %101 = vector.broadcast %100 : vector<1x2xf32> to vector<8x2xf32>
    %102 = arith.addf %99, %101 : vector<8x2xf32>
    %cst_32 = arith.constant dense<0xFF800000> : vector<8xf32>
    %103 = vector.multi_reduction <maximumf>, %102, %cst_32 [1] : vector<8x2xf32> to vector<8xf32>
    %104 = vector.shape_cast %103 : vector<8xf32> to vector<8x1xf32>
    %105 = vector.broadcast %104 : vector<8x1xf32> to vector<8x2xf32>
    %106 = arith.subf %102, %105 : vector<8x2xf32>
    %107 = math.exp %106 : vector<8x2xf32>
    %cst_33 = arith.constant dense<0.000000e+00> : vector<8xf32>
    %108 = vector.multi_reduction <add>, %107, %cst_33 [1] : vector<8x2xf32> to vector<8xf32>
    %109 = vector.shape_cast %108 : vector<8xf32> to vector<8x1xf32>
    %110 = math.log %109 : vector<8x1xf32>
    %111 = arith.addf %110, %104 : vector<8x1xf32>
    %112 = vector.broadcast %111 : vector<8x1xf32> to vector<8x2xf32>
    %113 = arith.subf %102, %112 : vector<8x2xf32>
    %c0_34 = arith.constant 0 : index
    %c0_35 = arith.constant 0 : index
    %114 = vector.load %arg7[%c0_34, %c0_35] : memref<8x2xf32, #tpu.memory_space<vmem>>, vector<8x2xf32>
    tpu.vector_store %arg7[%c0_34, %c0_35], %113 {strides = array<i32>} : memref<8x2xf32, #tpu.memory_space<vmem>>, vector<8x2xf32>,
    return
  }
  func.func @transform_0(%arg0: i32) -> (i32, i32) {
    %c0_i32 = arith.constant 0 : i32
    %c0_i32_0 = arith.constant 0 : i32
    return %arg0, %c0_i32 : i32, i32
  }
  func.func @transform_1(%arg0: i32) -> (i32, i32) {
    %c0_i32 = arith.constant 0 : i32
    %c0_i32_0 = arith.constant 0 : i32
    %c0_i32_1 = arith.constant 0 : i32
    return %c0_i32, %c0_i32_0 : i32, i32
  }
  func.func @transform_2(%arg0: i32) -> (i32, i32) {
    %c0_i32 = arith.constant 0 : i32
    %c0_i32_0 = arith.constant 0 : i32
    %c0_i32_1 = arith.constant 0 : i32
    return %c0_i32, %c0_i32_0 : i32, i32
  }
  func.func @transform_3(%arg0: i32) -> (i32, i32) {
    %c0_i32 = arith.constant 0 : i32
    %c0_i32_0 = arith.constant 0 : i32
    %c0_i32_1 = arith.constant 0 : i32
    return %c0_i32, %c0_i32_0 : i32, i32
  }
  func.func @transform_4(%arg0: i32) -> (i32, i32) {
    %c0_i32 = arith.constant 0 : i32
    %c0_i32_0 = arith.constant 0 : i32
    %c0_i32_1 = arith.constant 0 : i32
    return %c0_i32, %c0_i32_0 : i32, i32
  }
  func.func @transform_5(%arg0: i32) -> (i32, i32) {
    %c0_i32 = arith.constant 0 : i32
    %c0_i32_0 = arith.constant 0 : i32
    %c0_i32_1 = arith.constant 0 : i32
    return %c0_i32, %c0_i32_0 : i32, i32
  }
  func.func @transform_6(%arg0: i32) -> (i32, i32) {
    %c0_i32 = arith.constant 0 : i32
    %c0_i32_0 = arith.constant 0 : i32
    return %arg0, %c0_i32 : i32, i32
  }
}

</mosaic_0001>

<llo_original>
// kernel: tpu_custom_call.1
$region0: #{tpu_custom_call.1}
  #allocation0 [shape = 'u32[]', space=smem, size = 0x4, offset = 0x4, fixed_abs, tag = 'smem constant byte address 0x4 - core index']
  #allocation1 [shape = 'u32[144,128]{1,0:T(1,128)}', space=vmem, size = 0x12000, scoped, tag = 'internal scratch']
  %s0 = inlined_call_operand.hbm [shape: s32[8,8], index: 0, kind: input, shape index: {}]
  %s1 = inlined_call_operand.vmem [shape: bf16[128,128], index: 1, kind: input, shape index: {}]
  %s2 = inlined_call_operand.hbm [shape: bf16[128,128], index: 2, kind: input, shape index: {}]
  %s3 = inlined_call_operand.vmem [shape: f32[1,128], index: 3, kind: input, shape index: {}]
  %s4 = inlined_call_operand.vmem [shape: bf16[128,2], index: 4, kind: input, shape index: {}]
  %s5 = inlined_call_operand.vmem [shape: f32[1,2], index: 5, kind: input, shape index: {}]
  %s6 = inlined_call_operand.vmem [shape: f32[8,2], index: 6, kind: output, shape index: {}]
  %s7 = sld [smem:[#allocation0]]
  $region42: #{tpu_custom_call.1} parent=0
    _
  %s9 = ssub.s32 1, %s7
  %s10 = scalar_select 0, %s9, %s7
  $region1: #{tpu_custom_call.1} parent=0
    #allocation2 [shape = 'u8[4096]{0}', space=vmem, size = 0x1000, scoped, tag = 'input window, operand 0, single buffered']
    #allocation3 [shape = 's32[1]{0}', space=sflag, size = 0x4, scoped, tag = 'scoped memory for tpu_custom_call.1']
    #allocation4 [shape = 'u8[32768]{0}', space=vmem, size = 0x8000, scoped, tag = 'input window, operand 2, single buffered']
    #allocation5 [shape = 's32[1]{0}', space=sflag, size = 0x4, scoped, tag = 'scoped memory for tpu_custom_call.1']
    %11 = vsyncpa [#allocation3], 0
    %12 = vsyncpa [#allocation5], 0
    // Predicated region
    $region2: #{tpu_custom_call.1} parent=1 // pred_check
      _
    $region3: #{tpu_custom_call.1} parent=1 // pred_check_branch
      %14 = sbr.rel (0) target = $region5
    $region4: #{tpu_custom_call.1} parent=1 // pred_region
      %s16 = ssub.s32 128, 128
      %17 = vsyncadd [#allocation3], %s16
      %s19 = sshll.u32 [#allocation2], 4
      %s20 = int_to_ptr.vmem [resolvable:$true] %s19
      %22 = dma.hbm_to_vmem [thread:$0]  %s0, 128, %s20, [#allocation3]
    $region5: #{tpu_custom_call.1} parent=1 // pred_fallthru
      _
    // Predicated region
    $region6: #{tpu_custom_call.1} parent=1 // pred_check
      _
    $region7: #{tpu_custom_call.1} parent=1 // pred_check_branch
      %24 = sbr.rel (0) target = $region9
    $region8: #{tpu_custom_call.1} parent=1 // pred_region
      _
    $region9: #{tpu_custom_call.1} parent=1 // pred_fallthru
      _
    // Predicated region
    $region10: #{tpu_custom_call.1} parent=1 // pred_check
      _
    $region11: #{tpu_custom_call.1} parent=1 // pred_check_branch
      %26 = sbr.rel (0) target = $region13
    $region12: #{tpu_custom_call.1} parent=1 // pred_region
      %s28 = ssub.s32 1024, 1024
      %29 = vsyncadd [#allocation5], %s28
      %s30 = sshll.u32 [#allocation4], 4
      %s31 = int_to_ptr.vmem [resolvable:$true] %s30
      %36 = dma.hbm_to_vmem [thread:$0]  %s2, 1024, %s31, [#allocation5], 64, 64, 4
    $region13: #{tpu_custom_call.1} parent=1 // pred_fallthru
      _
    // Predicated region
    $region14: #{tpu_custom_call.1} parent=1 // pred_check
      _
    $region15: #{tpu_custom_call.1} parent=1 // pred_check_branch
      %38 = sbr.rel (0) target = $region17
    $region16: #{tpu_custom_call.1} parent=1 // pred_region
      _
    $region17: #{tpu_custom_call.1} parent=1 // pred_fallthru
      _
    // Predicated region
    $region18: #{tpu_custom_call.1} parent=1 // pred_check
      _
    $region19: #{tpu_custom_call.1} parent=1 // pred_check_branch
      %40 = sbr.rel (0) target = $region21
    $region20: #{tpu_custom_call.1} parent=1 // pred_region
      _
    $region21: #{tpu_custom_call.1} parent=1 // pred_fallthru
      _
    // Predicated region
    $region22: #{tpu_custom_call.1} parent=1 // pred_check
      _
    $region23: #{tpu_custom_call.1} parent=1 // pred_check_branch
      %42 = sbr.rel (0) target = $region25
    $region24: #{tpu_custom_call.1} parent=1 // pred_region
      _
    $region25: #{tpu_custom_call.1} parent=1 // pred_fallthru
      _
    // Predicated region
    $region26: #{tpu_custom_call.1} parent=1 // pred_check
      _
    $region27: #{tpu_custom_call.1} parent=1 // pred_check_branch
      %44 = sbr.rel (0) target = $region29
    $region28: #{tpu_custom_call.1} parent=1 // pred_region
      %45 = dma.done [#allocation3], 128
    $region29: #{tpu_custom_call.1} parent=1 // pred_fallthru
      _
    // Predicated region
    $region30: #{tpu_custom_call.1} parent=1 // pred_check
      _
    $region31: #{tpu_custom_call.1} parent=1 // pred_check_branch
      %47 = sbr.rel (0) target = $region33
    $region32: #{tpu_custom_call.1} parent=1 // pred_region
      %48 = dma.done [#allocation5], 1024
    $region33: #{tpu_custom_call.1} parent=1 // pred_fallthru
      _
    %v50 = vld [vmem:[#allocation2] sm:$0xff]
    %v51 = vlaneseq
    %v52 = vand.u32 %v51, 127
    %vm53 = vcmp.eq.s32.totalorder %v52, 0
    %v54 = vsel %vm53, %v50, 0
    %vm55 = vcmask 64512
    %v56 = vsel %vm55, %v54, 0
    %v57 = vand.u32 %v56, 65535
    %v58 = vshrl.u32 %v56, 16
    %v59 = vcvt.s32.f32 %v57
    %v60 = vcvt.s32.f32 %v58
    %61 = vadd.xlane.f32.xlu0 %v59
    %v62 = vpop.xlane.xlu0 %61
    %63 = vadd.xlane.f32.xlu0 %v60
    %v64 = vpop.xlane.xlu0 %63
    %v65 = vcvt.f32.s32 %v62
    %v66 = vcvt.f32.s32 %v64
    %v67 = vshll.u32 %v66, 16
    %v68 = vadd.s32 %v67, %v65
    %vm69 = vcmp.eq.s32.totalorder %v68, %v52
    %v70 = vsel %vm69, 1, 0
    %vm71 = vcmp.eq.s32.totalorder %v52, 1
    %v72 = vsel %vm71, %v50, 0
    %v73 = vsel %vm55, %v72, 0
    %v74 = vand.u32 %v73, 65535
    %v75 = vshrl.u32 %v73, 16
    %v76 = vcvt.s32.f32 %v74
    %v77 = vcvt.s32.f32 %v75
    %78 = vadd.xlane.f32.xlu0 %v76
    %v79 = vpop.xlane.xlu0 %78
    %80 = vadd.xlane.f32.xlu0 %v77
    %v81 = vpop.xlane.xlu0 %80
    %v82 = vcvt.f32.s32 %v79
    %v83 = vcvt.f32.s32 %v81
    %v84 = vshll.u32 %v83, 16
    %v85 = vadd.s32 %v84, %v82
    %vm86 = vcmp.eq.s32.totalorder %v85, %v52
    %v87 = vsel %vm86, 1, 0
    %v88 = vadd.s32 %v70, %v87
    %vm89 = vcmp.eq.s32.totalorder %v52, 2
    %v90 = vsel %vm89, %v50, 0
    %v91 = vsel %vm55, %v90, 0
    %v92 = vand.u32 %v91, 65535
    %v93 = vshrl.u32 %v91, 16
    %v94 = vcvt.s32.f32 %v92
    %v95 = vcvt.s32.f32 %v93
    %96 = vadd.xlane.f32.xlu0 %v94
    %v97 = vpop.xlane.xlu0 %96
    %98 = vadd.xlane.f32.xlu0 %v95
    %v99 = vpop.xlane.xlu0 %98
    %v100 = vcvt.f32.s32 %v97
    %v101 = vcvt.f32.s32 %v99
    %v102 = vshll.u32 %v101, 16
    %v103 = vadd.s32 %v102, %v100
    %vm104 = vcmp.eq.s32.totalorder %v103, %v52
    %v105 = vsel %vm104, 1, 0
    %v106 = vadd.s32 %v88, %v105
    %vm107 = vcmp.eq.s32.totalorder %v52, 3
    %v108 = vsel %vm107, %v50, 0
    %v109 = vsel %vm55, %v108, 0
    %v110 = vand.u32 %v109, 65535
    %v111 = vshrl.u32 %v109, 16
    %v112 = vcvt.s32.f32 %v110
    %v113 = vcvt.s32.f32 %v111
    %114 = vadd.xlane.f32.xlu0 %v112
    %v115 = vpop.xlane.xlu0 %114
    %116 = vadd.xlane.f32.xlu0 %v113
    %v117 = vpop.xlane.xlu0 %116
    %v118 = vcvt.f32.s32 %v115
    %v119 = vcvt.f32.s32 %v117
    %v120 = vshll.u32 %v119, 16
    %v121 = vadd.s32 %v120, %v118
    %vm122 = vcmp.eq.s32.totalorder %v121, %v52
    %v123 = vsel %vm122, 1, 0
    %v124 = vadd.s32 %v106, %v123
    %vm125 = vcmp.eq.s32.totalorder %v52, 4
    %v126 = vsel %vm125, %v50, 0
    %v127 = vsel %vm55, %v126, 0
    %v128 = vand.u32 %v127, 65535
    %v129 = vshrl.u32 %v127, 16
    %v130 = vcvt.s32.f32 %v128
    %v131 = vcvt.s32.f32 %v129
    %132 = vadd.xlane.f32.xlu0 %v130
    %v133 = vpop.xlane.xlu0 %132
    %134 = vadd.xlane.f32.xlu0 %v131
    %v135 = vpop.xlane.xlu0 %134
    %v136 = vcvt.f32.s32 %v133
    %v137 = vcvt.f32.s32 %v135
    %v138 = vshll.u32 %v137, 16
    %v139 = vadd.s32 %v138, %v136
    %vm140 = vcmp.eq.s32.totalorder %v139, %v52
    %v141 = vsel %vm140, 1, 0
    %v142 = vadd.s32 %v124, %v141
    %vm143 = vcmp.eq.s32.totalorder %v52, 5
    %v144 = vsel %vm143, %v50, 0
    %v145 = vsel %vm55, %v144, 0
    %v146 = vand.u32 %v145, 65535
    %v147 = vshrl.u32 %v145, 16
    %v148 = vcvt.s32.f32 %v146
    %v149 = vcvt.s32.f32 %v147
    %150 = vadd.xlane.f32.xlu0 %v148
    %v151 = vpop.xlane.xlu0 %150
    %152 = vadd.xlane.f32.xlu0 %v149
    %v153 = vpop.xlane.xlu0 %152
    %v154 = vcvt.f32.s32 %v151
    %v155 = vcvt.f32.s32 %v153
    %v156 = vshll.u32 %v155, 16
    %v157 = vadd.s32 %v156, %v154
    %vm158 = vcmp.eq.s32.totalorder %v157, %v52
    %v159 = vsel %vm158, 1, 0
    %v160 = vadd.s32 %v142, %v159
    %vm161 = vcmp.eq.s32.totalorder %v52, 6
    %v162 = vsel %vm161, %v50, 0
    %v163 = vsel %vm55, %v162, 0
    %v164 = vand.u32 %v163, 65535
    %v165 = vshrl.u32 %v163, 16
    %v166 = vcvt.s32.f32 %v164
    %v167 = vcvt.s32.f32 %v165
    %168 = vadd.xlane.f32.xlu0 %v166
    %v169 = vpop.xlane.xlu0 %168
    %170 = vadd.xlane.f32.xlu0 %v167
    %v171 = vpop.xlane.xlu0 %170
    %v172 = vcvt.f32.s32 %v169
    %v173 = vcvt.f32.s32 %v171
    %v174 = vshll.u32 %v173, 16
    %v175 = vadd.s32 %v174, %v172
    %vm176 = vcmp.eq.s32.totalorder %v175, %v52
    %v177 = vsel %vm176, 1, 0
    %v178 = vadd.s32 %v160, %v177
    %vm179 = vcmp.eq.s32.totalorder %v52, 7
    %v180 = vsel %vm179, %v50, 0
    %v181 = vsel %vm55, %v180, 0
    %v182 = vand.u32 %v181, 65535
    %v183 = vshrl.u32 %v181, 16
    %v184 = vcvt.s32.f32 %v182
    %v185 = vcvt.s32.f32 %v183
    %186 = vadd.xlane.f32.xlu0 %v184
    %v187 = vpop.xlane.xlu0 %186
    %188 = vadd.xlane.f32.xlu0 %v185
    %v189 = vpop.xlane.xlu0 %188
    %v190 = vcvt.f32.s32 %v187
    %v191 = vcvt.f32.s32 %v189
    %v192 = vshll.u32 %v191, 16
    %v193 = vadd.s32 %v192, %v190
    %vm194 = vcmp.eq.s32.totalorder %v193, %v52
    %v195 = vsel %vm194, 1, 0
    %v196 = vadd.s32 %v178, %v195
    %v197 = vcvt.s32.f32 %v196
    %v198 = vpack.c.bf16 %v197, %v197
    %v199 = vld [vmem:[%s1] sm:$0xf]
    %v200 = vld [vmem:[%s1 + $0x4] sm:$0xf]
    %v201 = vld [vmem:[%s1 + $0x8] sm:$0xf]
    %v202 = vld [vmem:[%s1 + $0xc] sm:$0xf]
    %v203 = vld [vmem:[%s1 + $0x10] sm:$0xf]
    %v204 = vld [vmem:[%s1 + $0x14] sm:$0xf]
    %v205 = vld [vmem:[%s1 + $0x18] sm:$0xf]
    %v206 = vld [vmem:[%s1 + $0x1c] sm:$0xf]
    %v207 = vld [vmem:[%s1 + $0x20] sm:$0xf]
    %v208 = vld [vmem:[%s1 + $0x24] sm:$0xf]
    %v209 = vld [vmem:[%s1 + $0x28] sm:$0xf]
    %v210 = vld [vmem:[%s1 + $0x2c] sm:$0xf]
    %v211 = vld [vmem:[%s1 + $0x30] sm:$0xf]
    %v212 = vld [vmem:[%s1 + $0x34] sm:$0xf]
    %v213 = vld [vmem:[%s1 + $0x38] sm:$0xf]
    %v214 = vld [vmem:[%s1 + $0x3c] sm:$0xf]
    %v231 = vunpack.c.l.b16 %v199
    %v232 = vunpack.c.l.b16 %v200
    %v233 = vunpack.c.l.b16 %v201
    %v234 = vunpack.c.l.b16 %v202
    %v235 = vunpack.c.l.b16 %v203
    %v236 = vunpack.c.l.b16 %v204
    %v237 = vunpack.c.l.b16 %v205
    %v238 = vunpack.c.l.b16 %v206
    %v239 = vunpack.c.l.b16 %v207
    %v240 = vunpack.c.l.b16 %v208
    %v241 = vunpack.c.l.b16 %v209
    %v242 = vunpack.c.l.b16 %v210
    %v243 = vunpack.c.l.b16 %v211
    %v244 = vunpack.c.l.b16 %v212
    %v245 = vunpack.c.l.b16 %v213
    %v246 = vunpack.c.l.b16 %v214
    %v247 = vpack.c.b16 %v232, %v231
    %v248 = vpack.c.b16 %v234, %v233
    %v249 = vpack.c.b16 %v236, %v235
    %v250 = vpack.c.b16 %v238, %v237
    %v251 = vpack.c.b16 %v240, %v239
    %v252 = vpack.c.b16 %v242, %v241
    %v253 = vpack.c.b16 %v244, %v243
    %v254 = vpack.c.b16 %v246, %v245
    %263 = vmatprep.subr.bf16.mxu0 0
    %264 = vmatpush1.bf16.msra.mxu0 %v254
    %265 = vmatprep.subr.bf16.mxu0 0
    %266 = vmatpush1.bf16.msra.mxu0 %v253
    %267 = vmatprep.subr.bf16.mxu0 0
    %268 = vmatpush1.bf16.msra.mxu0 %v252
    %269 = vmatprep.subr.bf16.mxu0 0
    %270 = vmatpush1.bf16.msra.mxu0 %v251
    %271 = vmatprep.subr.bf16.mxu0 0
    %272 = vmatpush1.bf16.msra.mxu0 %v250
    %273 = vmatprep.subr.bf16.mxu0 0
    %274 = vmatpush1.bf16.msra.mxu0 %v249
    %275 = vmatprep.subr.bf16.mxu0 0
    %276 = vmatpush1.bf16.msra.mxu0 %v248
    %277 = vmatprep.subr.bf16.mxu0 0
    %278 = vmatpush1.bf16.msra.mxu0 %v247
    %279 = vmatprep.subr.bf16.mxu0 0
    %280 = vmatpush2.bf16.msra.mxu0 0
    %281 = vmatprep.subr.bf16.mxu0 0
    %282 = vmatpush2.bf16.msra.mxu0 0
    %283 = vmatprep.subr.bf16.mxu0 0
    %284 = vmatpush2.bf16.msra.mxu0 0
    %285 = vmatprep.subr.bf16.mxu0 0
    %286 = vmatpush2.bf16.msra.mxu0 0
    %287 = vmatprep.subr.bf16.mxu0 0
    %288 = vmatpush2.bf16.msra.mxu0 0
    %289 = vmatprep.subr.bf16.mxu0 0
    %290 = vmatpush2.bf16.msra.mxu0 0
    %291 = vmatprep.subr.bf16.mxu0 0
    %292 = vmatpush2.bf16.msra.mxu0 0
    %293 = vmatprep.subr.bf16.mxu0 0
    %294 = vmatpush2.bf16.msra.mxu0 0
    %295 = vmatprep.mubr.bf16.mxu0 0
    %296 = vmatmul.mubr.bf16.gmra.mxu0 %v198
    %v297 = vpop.f32.mrf.mxu0
    %v298 = vadd.f32 0.0, %v297
    %v299 = vpop.f32.mrf.mxu0
    %v300 = vpop.f32.mrf.mxu0
    %v301 = vpop.f32.mrf.mxu0
    %302 = vdwg.mxu0
    %v303 = vmul.f32 %v298, 0.125
    %v304 = vpack.c.bf16 %v303, %v303
    %v305 = vld [vmem:[#allocation4] sm:$0xf]
    %v306 = vld [vmem:[#allocation4 + $0x4] sm:$0xf]
    %v307 = vld [vmem:[#allocation4 + $0x8] sm:$0xf]
    %v308 = vld [vmem:[#allocation4 + $0xc] sm:$0xf]
    %v309 = vld [vmem:[#allocation4 + $0x10] sm:$0xf]
    %v310 = vld [vmem:[#allocation4 + $0x14] sm:$0xf]
    %v311 = vld [vmem:[#allocation4 + $0x18] sm:$0xf]
    %v312 = vld [vmem:[#allocation4 + $0x1c] sm:$0xf]
    %v313 = vld [vmem:[#allocation4 + $0x20] sm:$0xf]
    %v314 = vld [vmem:[#allocation4 + $0x24] sm:$0xf]
    %v315 = vld [vmem:[#allocation4 + $0x28] sm:$0xf]
    %v316 = vld [vmem:[#allocation4 + $0x2c] sm:$0xf]
    %v317 = vld [vmem:[#allocation4 + $0x30] sm:$0xf]
    %v318 = vld [vmem:[#allocation4 + $0x34] sm:$0xf]
    %v319 = vld [vmem:[#allocation4 + $0x38] sm:$0xf]
    %v320 = vld [vmem:[#allocation4 + $0x3c] sm:$0xf]
    %v321 = vld [vmem:[%s3] sm:$0x1]
    %v323 = vlaneseq
    %v324 = vshrl.u32 %v323, 7
    %v325 = vsub.s32 0, %v324
    %v326 = vrot.slane %v321, %v325
    %v344 = vunpack.c.l.b16 %v305
    %v345 = vunpack.c.l.b16 %v306
    %v346 = vunpack.c.l.b16 %v307
    %v347 = vunpack.c.l.b16 %v308
    %v348 = vunpack.c.l.b16 %v309
    %v349 = vunpack.c.l.b16 %v310
    %v350 = vunpack.c.l.b16 %v311
    %v351 = vunpack.c.l.b16 %v312
    %v352 = vunpack.c.l.b16 %v313
    %v353 = vunpack.c.l.b16 %v314
    %v354 = vunpack.c.l.b16 %v315
    %v355 = vunpack.c.l.b16 %v316
    %v356 = vunpack.c.l.b16 %v317
    %v357 = vunpack.c.l.b16 %v318
    %v358 = vunpack.c.l.b16 %v319
    %v359 = vunpack.c.l.b16 %v320
    %v360 = vpack.c.b16 %v345, %v344
    %v361 = vpack.c.b16 %v347, %v346
    %v362 = vpack.c.b16 %v349, %v348
    %v363 = vpack.c.b16 %v351, %v350
    %v364 = vpack.c.b16 %v353, %v352
    %v365 = vpack.c.b16 %v355, %v354
    %v366 = vpack.c.b16 %v357, %v356
    %v367 = vpack.c.b16 %v359, %v358
    %376 = vmatprep.subr.bf16.mxu0 0
    %377 = vmatpush1.bf16.msra.mxu0 %v367
    %378 = vmatprep.subr.bf16.mxu0 0
    %379 = vmatpush1.bf16.msra.mxu0 %v366
    %380 = vmatprep.subr.bf16.mxu0 0
    %381 = vmatpush1.bf16.msra.mxu0 %v365
    %382 = vmatprep.subr.bf16.mxu0 0
    %383 = vmatpush1.bf16.msra.mxu0 %v364
    %384 = vmatprep.subr.bf16.mxu0 0
    %385 = vmatpush1.bf16.msra.mxu0 %v363
    %386 = vmatprep.subr.bf16.mxu0 0
    %387 = vmatpush1.bf16.msra.mxu0 %v362
    %388 = vmatprep.subr.bf16.mxu0 0
    %389 = vmatpush1.bf16.msra.mxu0 %v361
    %390 = vmatprep.subr.bf16.mxu0 0
    %391 = vmatpush1.bf16.msra.mxu0 %v360
    %392 = vmatprep.subr.bf16.mxu0 0
    %393 = vmatpush2.bf16.msra.mxu0 0
    %394 = vmatprep.subr.bf16.mxu0 0
    %395 = vmatpush2.bf16.msra.mxu0 0
    %396 = vmatprep.subr.bf16.mxu0 0
    %397 = vmatpush2.bf16.msra.mxu0 0
    %398 = vmatprep.subr.bf16.mxu0 0
    %399 = vmatpush2.bf16.msra.mxu0 0
    %400 = vmatprep.subr.bf16.mxu0 0
    %401 = vmatpush2.bf16.msra.mxu0 0
    %402 = vmatprep.subr.bf16.mxu0 0
    %403 = vmatpush2.bf16.msra.mxu0 0
    %404 = vmatprep.subr.bf16.mxu0 0
    %405 = vmatpush2.bf16.msra.mxu0 0
    %406 = vmatprep.subr.bf16.mxu0 0
    %407 = vmatpush2.bf16.msra.mxu0 0
    %408 = vmatprep.mubr.bf16.mxu0 0
    %409 = vmatmul.mubr.bf16.gmra.mxu0 %v304
    %v410 = vpop.f32.mrf.mxu0
    %v411 = vadd.f32 %v326, %v410
    %v412 = vpop.f32.mrf.mxu0
    %v413 = vpop.f32.mrf.mxu0
    %v414 = vpop.f32.mrf.mxu0
    %415 = vdwg.mxu0
    %v416 = vmax.f32 %v411, 0.0
    %v417 = vpack.c.bf16 %v416, %v416
    %v418 = vld [vmem:[%s4] sm:$0xf]
    %v419 = vld [vmem:[%s4 + $0x4] sm:$0xf]
    %v420 = vld [vmem:[%s4 + $0x8] sm:$0xf]
    %v421 = vld [vmem:[%s4 + $0xc] sm:$0xf]
    %v422 = vld [vmem:[%s4 + $0x10] sm:$0xf]
    %v423 = vld [vmem:[%s4 + $0x14] sm:$0xf]
    %v424 = vld [vmem:[%s4 + $0x18] sm:$0xf]
    %v425 = vld [vmem:[%s4 + $0x1c] sm:$0xf]
    %v426 = vld [vmem:[%s4 + $0x20] sm:$0xf]
    %v427 = vld [vmem:[%s4 + $0x24] sm:$0xf]
    %v428 = vld [vmem:[%s4 + $0x28] sm:$0xf]
    %v429 = vld [vmem:[%s4 + $0x2c] sm:$0xf]
    %v430 = vld [vmem:[%s4 + $0x30] sm:$0xf]
    %v431 = vld [vmem:[%s4 + $0x34] sm:$0xf]
    %v432 = vld [vmem:[%s4 + $0x38] sm:$0xf]
    %v433 = vld [vmem:[%s4 + $0x3c] sm:$0xf]
    %v434 = vld [vmem:[%s5] sm:$0x1]
    %v436 = vlaneseq
    %v437 = vshrl.u32 %v436, 7
    %v438 = vsub.s32 0, %v437
    %v439 = vrot.slane %v434, %v438
    %v457 = vunpack.c.l.b16 %v418
    %v458 = vunpack.c.l.b16 %v419
    %v459 = vunpack.c.l.b16 %v420
    %v460 = vunpack.c.l.b16 %v421
    %v461 = vunpack.c.l.b16 %v422
    %v462 = vunpack.c.l.b16 %v423
    %v463 = vunpack.c.l.b16 %v424
    %v464 = vunpack.c.l.b16 %v425
    %v465 = vunpack.c.l.b16 %v426
    %v466 = vunpack.c.l.b16 %v427
    %v467 = vunpack.c.l.b16 %v428
    %v468 = vunpack.c.l.b16 %v429
    %v469 = vunpack.c.l.b16 %v430
    %v470 = vunpack.c.l.b16 %v431
    %v471 = vunpack.c.l.b16 %v432
    %v472 = vunpack.c.l.b16 %v433
    %v473 = vpack.c.b16 %v458, %v457
    %v474 = vpack.c.b16 %v460, %v459
    %v475 = vpack.c.b16 %v462, %v461
    %v476 = vpack.c.b16 %v464, %v463
    %v477 = vpack.c.b16 %v466, %v465
    %v478 = vpack.c.b16 %v468, %v467
    %v479 = vpack.c.b16 %v470, %v469
    %v480 = vpack.c.b16 %v472, %v471
    %489 = vmatprep.subr.bf16.mxu0 0
    %490 = vmatpush1.bf16.msra.mxu0 %v480
    %491 = vmatprep.subr.bf16.mxu0 0
    %492 = vmatpush1.bf16.msra.mxu0 %v479
    %493 = vmatprep.subr.bf16.mxu0 0
    %494 = vmatpush1.bf16.msra.mxu0 %v478
    %495 = vmatprep.subr.bf16.mxu0 0
    %496 = vmatpush1.bf16.msra.mxu0 %v477
    %497 = vmatprep.subr.bf16.mxu0 0
    %498 = vmatpush1.bf16.msra.mxu0 %v476
    %499 = vmatprep.subr.bf16.mxu0 0
    %500 = vmatpush1.bf16.msra.mxu0 %v475
    %501 = vmatprep.subr.bf16.mxu0 0
    %502 = vmatpush1.bf16.msra.mxu0 %v474
    %503 = vmatprep.subr.bf16.mxu0 0
    %504 = vmatpush1.bf16.msra.mxu0 %v473
    %505 = vmatprep.subr.bf16.mxu0 0
    %506 = vmatpush2.bf16.msra.mxu0 0
    %507 = vmatprep.subr.bf16.mxu0 0
    %508 = vmatpush2.bf16.msra.mxu0 0
    %509 = vmatprep.subr.bf16.mxu0 0
    %510 = vmatpush2.bf16.msra.mxu0 0
    %511 = vmatprep.subr.bf16.mxu0 0
    %512 = vmatpush2.bf16.msra.mxu0 0
    %513 = vmatprep.subr.bf16.mxu0 0
    %514 = vmatpush2.bf16.msra.mxu0 0
    %515 = vmatprep.subr.bf16.mxu0 0
    %516 = vmatpush2.bf16.msra.mxu0 0
    %517 = vmatprep.subr.bf16.mxu0 0
    %518 = vmatpush2.bf16.msra.mxu0 0
    %519 = vmatprep.subr.bf16.mxu0 0
    %520 = vmatpush2.bf16.msra.mxu0 0
    %521 = vmatprep.mubr.bf16.mxu0 0
    %522 = vmatmul.mubr.bf16.gmra.mxu0 %v417
    %v523 = vpop.f32.mrf.mxu0
    %v524 = vadd.f32 %v439, %v523
    %v525 = vpop.f32.mrf.mxu0
    %v526 = vpop.f32.mrf.mxu0
    %v527 = vpop.f32.mrf.mxu0
    %528 = vdwg.mxu0
    %vm529 = vcmask 15360
    %v530 = vsel %vm529, %v524, -inf
    %531 = vmax.xlane.f32.xlu0 %v530
    %v532 = vpop.xlane.xlu0 %531
    %v533 = vsub.f32 %v524, %v532
    %v534 = vmul.f32 %v533, 1.442695
    %v535 = vpow.pop %v534
    %v536 = vsel %vm529, %v535, 0.0
    %537 = vadd.xlane.f32.xlu0 %v536
    %v538 = vpop.xlane.xlu0 %537
    %v539 = vlog2.pop %v538
    %v540 = vmul.f32 %v539, 0.6931472
    %v541 = vadd.f32 %v540, %v532
    %v542 = vsub.f32 %v524, %v541
    %543 = vst.msk [vmem:[%s6] sm:$0xff] %vm529, %v542
    // Predicated region
    $region34: #{tpu_custom_call.1} parent=1 // pred_check
      _
    $region35: #{tpu_custom_call.1} parent=1 // pred_check_branch
      %545 = sbr.rel (0) target = $region37
    $region36: #{tpu_custom_call.1} parent=1 // pred_region
      _
    $region37: #{tpu_custom_call.1} parent=1 // pred_fallthru
      _
    // Predicated region
    $region38: #{tpu_custom_call.1} parent=1 // pred_check
      _
    $region39: #{tpu_custom_call.1} parent=1 // pred_check_branch
      %547 = sbr.rel (0) target = $region41
    $region40: #{tpu_custom_call.1} parent=1 // pred_region
      _
    $region41: #{tpu_custom_call.1} parent=1 // pred_fallthru
      _
    %548 = vsyncpa [#allocation3], 1
    %549 = vsyncpa [#allocation5], 1

</llo_original>
